<compile_context>
chip_gen: v7x
topology: tpu7x:2x2x1
jax: 0.10.0
libtpu: 0.0.40
codegen_flags: <defaults>
</compile_context>

<pallas_src>
import math
import functools

import numpy as np
import jax
import jax.numpy as jnp
from jax import lax
from jax.experimental import pallas as pl
from jax.experimental.pallas import tpu as pltpu


# ----------------------------------------------------------------------------
# Kernel 1: row-tiled linear  y = x @ W + b   (value_proj)
# ----------------------------------------------------------------------------
def _linear_kernel(x_ref, w_ref, b_ref, o_ref):
    y = jnp.dot(x_ref[...], w_ref[...], preferred_element_type=jnp.float32)
    o_ref[...] = (y + b_ref[...]).astype(o_ref.dtype)


def linear(x, w, b, mxu_dtype=jnp.bfloat16, row_tile=512):
    rows, din = x.shape
    dout = w.shape[1]
    tm = rows if rows <= row_tile else row_tile
    # bf16 MXU operands (f32 accumulation); cast once in the wrapper.
    x = x.astype(mxu_dtype)
    w = w.astype(mxu_dtype)
    return pl.pallas_call(
        _linear_kernel,
        out_shape=jax.ShapeDtypeStruct((rows, dout), jnp.float32),
        grid=(pl.cdiv(rows, tm),),
        in_specs=[
            pl.BlockSpec((tm, din), lambda i: (i, 0)),
            pl.BlockSpec((din, dout), lambda i: (0, 0)),
            pl.BlockSpec((1, dout), lambda i: (0, 0)),
        ],
        out_specs=pl.BlockSpec((tm, dout), lambda i: (i, 0)),
        compiler_params=pltpu.CompilerParams(dimension_semantics=("parallel",)),
    )(x, w, b)


# ----------------------------------------------------------------------------
# Kernel 2: fused sampling_offsets + attention_weights projection
#   one MXU matmul over the concatenated weight; offsets written raw;
#   attention logits softmax'd per head (over num_levels*num_points) in-kernel.
# ----------------------------------------------------------------------------
def _fused_proj_softmax_kernel(x_ref, w_ref, b_ref, off_ref, attn_ref, *,
                               num_heads, lp, off_dim):
    y = jnp.dot(x_ref[...], w_ref[...], preferred_element_type=jnp.float32)
    y = y + b_ref[...]
    off_ref[...] = y[:, :off_dim].astype(off_ref.dtype)
    logits = y[:, off_dim:]
    # Per-head softmax over the lp = num_levels*num_points columns.
    # NOTE: kept as a short static loop — Mosaic's sub-128-lane minor-dim
    # reshape / concatenate paths (lp < 128) are not reliably supported, and
    # this block is a tiny fraction of the module's cost.
    # TODO(synk): switch to a (tm, H, lp) reshape + single lane-dense store
    # once sub-128 minor-dim reshapes lower cleanly.
    for h in range(num_heads):
        c = logits[:, h * lp:(h + 1) * lp]
        m = jnp.max(c, axis=-1, keepdims=True)
        e = jnp.exp(c - m)
        s = jnp.sum(e, axis=-1, keepdims=True)
        attn_ref[:, h * lp:(h + 1) * lp] = (e / s).astype(attn_ref.dtype)


def fused_offsets_attn(x, so_w, so_b, aw_w, aw_b, num_heads, lp,
                       mxu_dtype=jnp.bfloat16, row_tile=512):
    rows, din = x.shape
    off_dim = so_w.shape[1]
    attn_dim = aw_w.shape[1]
    dout = off_dim + attn_dim
    w = jnp.concatenate([so_w, aw_w], axis=1).astype(mxu_dtype)
    b = jnp.concatenate([so_b, aw_b], axis=1)
    x = x.astype(mxu_dtype)
    tm = rows if rows <= row_tile else row_tile
    kernel = functools.partial(_fused_proj_softmax_kernel,
                               num_heads=num_heads, lp=lp, off_dim=off_dim)
    return pl.pallas_call(
        kernel,
        out_shape=(jax.ShapeDtypeStruct((rows, off_dim), jnp.float32),
                   jax.ShapeDtypeStruct((rows, attn_dim), jnp.float32)),
        grid=(pl.cdiv(rows, tm),),
        in_specs=[
            pl.BlockSpec((tm, din), lambda i: (i, 0)),
            pl.BlockSpec((din, dout), lambda i: (0, 0)),
            pl.BlockSpec((1, dout), lambda i: (0, 0)),
        ],
        out_specs=[
            pl.BlockSpec((tm, off_dim), lambda i: (i, 0)),
            pl.BlockSpec((tm, attn_dim), lambda i: (i, 0)),
        ],
        compiler_params=pltpu.CompilerParams(dimension_semantics=("parallel",)),
    )(x, w, b)


# ----------------------------------------------------------------------------
# Kernel 3: multi-scale deformable aggregation
#   value : (bs, num_heads, nv_pad, head_dim)   (head-major, level-128-padded,
#                                                cast to mxu_dtype in wrapper)
#   locx/locy/attn : (bs, num_query, L*H*P)     (level-major column ordering)
#   out   : (bs, num_query, num_heads*head_dim) f32
#
# Grid: (bs, query_tiles), both parallel.  Per grid step:
#   acc(tq,E) <- 0
#   for lvl:                      # per-level corner math (contiguous chunk)
#       for h:                    # per-(head,level) one-hot samp + one matmul
#           acc[:, head cols] += samp @ value[h, level rows]
#   o_ref[0] <- acc               # ONE lane-dense store
# ----------------------------------------------------------------------------
def _deform_agg_kernel(value_ref, locx_ref, locy_ref, attn_ref, o_ref, acc_ref,
                       *, num_heads, head_dim, num_levels, num_points,
                       spatial_shapes, level_starts_pad, level_hw_pad,
                       mxu_dtype):
    tq = acc_ref.shape[0]
    hp = num_heads * num_points
    acc_ref[...] = jnp.zeros_like(acc_ref)

    for lvl in range(num_levels):
        H_l, W_l = spatial_shapes[lvl]
        hw_pad = level_hw_pad[lvl]
        start = level_starts_pad[lvl]
        c0 = lvl * hp

        # Per-level contiguous chunk of sampling columns: corner math is
        # recomputed here so only ~12 (tq, H*P) temporaries are live at once.
        lx = locx_ref[0, :, c0:c0 + hp]
        ly = locy_ref[0, :, c0:c0 + hp]
        at = attn_ref[0, :, c0:c0 + hp]

        # grid_sample(align_corners=False): pixel = loc * size - 0.5
        px = lx * float(W_l) - 0.5
        py = ly * float(H_l) - 0.5
        x0f = jnp.floor(px)
        y0f = jnp.floor(py)
        fx = px - x0f
        fy = py - y0f
        x0 = x0f.astype(jnp.int32)
        y0 = y0f.astype(jnp.int32)
        x1 = x0 + 1
        y1 = y0 + 1
        vx0 = (x0 >= 0) & (x0 < W_l)
        vx1 = (x1 >= 0) & (x1 < W_l)
        vy0 = (y0 >= 0) & (y0 < H_l)
        vy1 = (y1 >= 0) & (y1 < H_l)
        # bilinear corner weights with attention and zero-padding validity
        # folded in (invalid corners get weight 0, so garbage indices are
        # harmless — they either miss or select a zero weight).
        w00 = jnp.where(vx0 & vy0, (1.0 - fx) * (1.0 - fy) * at, 0.0)
        w10 = jnp.where(vx1 & vy0, fx * (1.0 - fy) * at, 0.0)
        w01 = jnp.where(vx0 & vy1, (1.0 - fx) * fy * at, 0.0)
        w11 = jnp.where(vx1 & vy1, fx * fy * at, 0.0)
        # flat indices relative to this level's padded row block
        f00 = y0 * W_l + x0
        f10 = f00 + 1
        f01 = f00 + W_l
        f11 = f01 + 1
        corners = ((f00, w00), (f10, w10), (f01, w01), (f11, w11))

        # hoisted out of the head loop (depends only on the level)
        col_iota = lax.broadcasted_iota(jnp.int32, (tq, hw_pad), 1)

        for h in range(num_heads):
            # one-hot sampling matrix for this (head, level)
            # TODO(synk): replace with a DMA row gather at production hw sizes.
            samp = jnp.zeros((tq, hw_pad), jnp.float32)
            for p in range(num_points):
                c = h * num_points + p
                for f, w in corners:
                    samp = samp + jnp.where(col_iota == f[:, c:c + 1],
                                            w[:, c:c + 1], 0.0)
            # head-major value: leading-axis slice, 128-aligned level rows
            val_h = value_ref[0, h, start:start + hw_pad, :]
            out_h = jnp.dot(samp.astype(mxu_dtype), val_h,
                            preferred_element_type=jnp.float32)
            acc_ref[:, h * head_dim:(h + 1) * head_dim] += out_h

    # single lane-dense store of the full (tq, E) output block
    o_ref[0] = acc_ref[...]


def deform_agg(value, locx, locy, attn, spatial_shapes,
               num_heads, head_dim, num_levels, num_points,
               mxu_dtype=jnp.bfloat16, q_tile=256):
    bs, nv, E = value.shape
    nq = locx.shape[1]
    hlp = locx.shape[2]                       # num_levels*num_heads*num_points
    tq = nq if nq <= q_tile else q_tile

    hw = [int(h) * int(w) for h, w in spatial_shapes]
    assert sum(hw) == nv, "spatial_shapes must tile num_value"
    hw_pad = [((s + 127) // 128) * 128 for s in hw]
    starts_pad = [0]
    for s in hw_pad[:-1]:
        starts_pad.append(starts_pad[-1] + s)
    nv_pad = sum(hw_pad)

    # (bs, nv, E) -> head-major, level-128-zero-padded (bs, H, nv_pad, hd),
    # cast ONCE to the MXU dtype (halves DMA bytes + VMEM residency for bf16).
    v4 = value.reshape(bs, nv, num_heads, head_dim).transpose(0, 2, 1, 3)
    pieces, off = [], 0
    for lvl in range(num_levels):
        piece = v4[:, :, off:off + hw[lvl], :]
        pad = hw_pad[lvl] - hw[lvl]
        if pad:
            piece = jnp.pad(piece, ((0, 0), (0, 0), (0, pad), (0, 0)))
        pieces.append(piece)
        off += hw[lvl]
    v_pad = jnp.concatenate(pieces, axis=2).astype(mxu_dtype)

    kernel = functools.partial(
        _deform_agg_kernel,
        num_heads=num_heads, head_dim=head_dim,
        num_levels=num_levels, num_points=num_points,
        spatial_shapes=tuple(tuple(int(x) for x in s) for s in spatial_shapes),
        level_starts_pad=tuple(starts_pad), level_hw_pad=tuple(hw_pad),
        mxu_dtype=mxu_dtype)

    # VMEM budget from the actual block sizes (+headroom), clamped.
    elt = jnp.dtype(mxu_dtype).itemsize
    vmem_need = (2 * num_heads * nv_pad * max(head_dim, 128) * elt  # value (dbl-buffered, lane-padded)
                 + 2 * 3 * tq * max(hlp, 128) * 4                   # locx/locy/attn blocks
                 + 2 * tq * max(E, 128) * 4                         # out block
                 + tq * max(E, 128) * 4)                            # acc scratch
    vmem_limit = int(min(max(vmem_need + (8 << 20), 32 << 20), 100 << 20))

    return pl.pallas_call(
        kernel,
        out_shape=jax.ShapeDtypeStruct((bs, nq, E), jnp.float32),
        grid=(bs, pl.cdiv(nq, tq)),
        in_specs=[
            # value: resident per batch (block index only changes with b)
            pl.BlockSpec((1, num_heads, nv_pad, head_dim),
                         lambda b, q: (b, 0, 0, 0)),
            pl.BlockSpec((1, tq, hlp), lambda b, q: (b, q, 0)),
            pl.BlockSpec((1, tq, hlp), lambda b, q: (b, q, 0)),
            pl.BlockSpec((1, tq, hlp), lambda b, q: (b, q, 0)),
        ],
        out_specs=pl.BlockSpec((1, tq, E), lambda b, q: (b, q, 0)),
        scratch_shapes=[pltpu.VMEM((tq, E), jnp.float32)],
        compiler_params=pltpu.CompilerParams(
            dimension_semantics=("parallel", "parallel"),
            vmem_limit_bytes=vmem_limit),
    )(v_pad, locx, locy, attn)


# ----------------------------------------------------------------------------
# Parameter init mirroring MSDeformableAttention3D.init_weights()
# ----------------------------------------------------------------------------
def init_params(key, embed_dims, num_heads, num_levels, num_points):
    thetas = jnp.arange(num_heads, dtype=jnp.float32) * (2.0 * math.pi / num_heads)
    grid_init = jnp.stack([jnp.cos(thetas), jnp.sin(thetas)], -1)            # (H, 2)
    grid_init = grid_init / jnp.max(jnp.abs(grid_init), axis=-1, keepdims=True)
    grid_init = jnp.tile(grid_init.reshape(num_heads, 1, 1, 2),
                         (1, num_levels, num_points, 1))
    scale = jnp.arange(1, num_points + 1, dtype=jnp.float32).reshape(1, 1, num_points, 1)
    grid_init = grid_init * scale
    so_b = grid_init.reshape(1, -1)                                          # (1, H*L*P*2)
    so_w = jnp.zeros((embed_dims, num_heads * num_levels * num_points * 2), jnp.float32)

    aw_w = jnp.zeros((embed_dims, num_heads * num_levels * num_points), jnp.float32)
    aw_b = jnp.zeros((1, num_heads * num_levels * num_points), jnp.float32)

    bound = math.sqrt(6.0 / (embed_dims + embed_dims))
    vp_w = jax.random.uniform(key, (embed_dims, embed_dims), jnp.float32,
                              minval=-bound, maxval=bound)
    vp_b = jnp.zeros((1, embed_dims), jnp.float32)

    return dict(so_w=so_w, so_b=so_b, aw_w=aw_w, aw_b=aw_b, vp_w=vp_w, vp_b=vp_b)


# ----------------------------------------------------------------------------
# Forward pass (batch_first=True)
# ----------------------------------------------------------------------------
def ms_deformable_attention_3d(query, value, reference_points,
                               spatial_shapes, level_start_index,
                               params, num_heads, num_levels, num_points,
                               query_pos=None, mxu_dtype=jnp.bfloat16):
    # spatial_shapes / level_start_index are static Python tuples.
    bs, nq, E = query.shape
    _, nv, _ = value.shape
    head_dim = E // num_heads
    if query_pos is not None:
        query = query + query_pos

    # value projection (Pallas row-tiled matmul)
    v = linear(value.reshape(bs * nv, E), params['vp_w'], params['vp_b'],
               mxu_dtype=mxu_dtype)
    v = v.reshape(bs, nv, E)

    # fused sampling-offsets + attention-weights projection (+ per-head softmax)
    off_flat, attn_flat = fused_offsets_attn(
        query.reshape(bs * nq, E),
        params['so_w'], params['so_b'], params['aw_w'], params['aw_b'],
        num_heads, num_levels * num_points, mxu_dtype=mxu_dtype)
    off = off_flat.reshape(bs, nq, num_heads, num_levels, num_points, 2)
    attn = attn_flat.reshape(bs, nq, num_heads, num_levels, num_points)

    # sampling locations (plain-JAX glue; matches the torch reshapes exactly)
    ss = jnp.array(spatial_shapes, jnp.float32)                   # (L, 2) (h, w)
    offset_normalizer = jnp.stack([ss[:, 1], ss[:, 0]], -1)       # (L, 2) (w, h)
    off = off / offset_normalizer[None, None, None, :, None, :]
    Z = reference_points.shape[2]                                 # num_Z_anchors
    off = off.reshape(bs, nq, num_heads, num_levels, num_points // Z, Z, 2)
    loc = reference_points[:, :, None, None, None, :, :] + off
    loc = loc.reshape(bs, nq, num_heads, num_levels, num_points, 2)

    # level-major column ordering (lvl, head, point) so the kernel reads one
    # contiguous chunk per level.
    loc = loc.transpose(0, 1, 3, 2, 4, 5).reshape(bs, nq, -1, 2)
    attn = attn.transpose(0, 1, 3, 2, 4).reshape(bs, nq, -1)
    locx = loc[..., 0]
    locy = loc[..., 1]

    # deformable sampling + weighted aggregation (Pallas kernel)
    out = deform_agg(v, locx, locy, attn, spatial_shapes,
                     num_heads, head_dim, num_levels, num_points,
                     mxu_dtype=mxu_dtype)
    return out, (v, locx, locy, attn)


# ----------------------------------------------------------------------------
# Numpy reference for the aggregation (grid_sample bilinear, zeros padding).
# locx/locy/attn use the kernel's level-major column layout.
# ----------------------------------------------------------------------------
def numpy_reference(value, locx, locy, attn, spatial_shapes, level_start,
                    num_heads, head_dim, num_levels, num_points):
    value = np.asarray(value); locx = np.asarray(locx)
    locy = np.asarray(locy); attn = np.asarray(attn)
    bs, nv, E = value.shape
    nq = locx.shape[1]
    out = np.zeros((bs, nq, E), np.float32)
    for b in range(bs):
        for q in range(nq):
            for h in range(num_heads):
                acc = np.zeros(head_dim, np.float32)
                for lvl in range(num_levels):
                    Hl, Wl = spatial_shapes[lvl]
                    start = level_start[lvl]
                    for p in range(num_points):
                        i = (lvl * num_heads + h) * num_points + p
                        x = locx[b, q, i] * Wl - 0.5
                        y = locy[b, q, i] * Hl - 0.5
                        x0 = int(math.floor(x)); y0 = int(math.floor(y))
                        lx = x - x0; ly = y - y0
                        for dx, dy, cw in ((0, 0, (1 - lx) * (1 - ly)),
                                           (1, 0, lx * (1 - ly)),
                                           (0, 1, (1 - lx) * ly),
                                           (1, 1, lx * ly)):
                            xi, yi = x0 + dx, y0 + dy
                            if 0 <= xi < Wl and 0 <= yi < Hl:
                                acc += (attn[b, q, i] * cw *
                                        value[b, start + yi * Wl + xi,
                                              h * head_dim:(h + 1) * head_dim])
                out[b, q, h * head_dim:(h + 1) * head_dim] = acc
    return out


if __name__ == "__main__":
    # Small, module-consistent shapes
    embed_dims, num_heads, num_levels, num_points = 32, 4, 2, 4
    bs, num_query = 2, 8
    num_Z_anchors = 2                                  # num_points % num_Z_anchors == 0
    spatial_shapes = ((8, 8), (4, 4))                  # (h, w) per level
    level_start_index = (0, 64)
    num_value = sum(h * w for h, w in spatial_shapes)  # 80

    key = jax.random.PRNGKey(0)
    k_q, k_v, k_r, k_p, k_aw, k_so = jax.random.split(key, 6)
    query = jax.random.normal(k_q, (bs, num_query, embed_dims), jnp.float32)
    value = jax.random.normal(k_v, (bs, num_value, embed_dims), jnp.float32)
    reference_points = jax.random.uniform(k_r, (bs, num_query, num_Z_anchors, 2),
                                          jnp.float32)
    params = init_params(k_p, embed_dims, num_heads, num_levels, num_points)
    # Perturb the zero-initialised projections so the softmax / offsets paths
    # are non-degenerate in the test (still valid module parameters).
    params['aw_w'] = 0.1 * jax.random.normal(k_aw, params['aw_w'].shape, jnp.float32)
    params['so_w'] = 0.01 * jax.random.normal(k_so, params['so_w'].shape, jnp.float32)

    # ---- reference-accuracy run: f32 MXU operands everywhere ----------------
    out_f32, (v32, lx32, ly32, at32) = ms_deformable_attention_3d(
        query, value, reference_points, spatial_shapes, level_start_index,
        params, num_heads, num_levels, num_points, mxu_dtype=jnp.float32)
    out_f32 = jax.block_until_ready(out_f32)

    ref32 = numpy_reference(v32, lx32, ly32, at32, spatial_shapes,
                            level_start_index, num_heads,
                            embed_dims // num_heads, num_levels, num_points)
    np.testing.assert_allclose(np.asarray(out_f32), ref32, rtol=1e-4, atol=1e-4)

    # per-head softmax check (f32 run vs float64 numpy), reordered level-major
    qf = np.asarray(query, np.float64).reshape(bs * num_query, embed_dims)
    logits = qf @ np.asarray(params['aw_w'], np.float64) + np.asarray(params['aw_b'], np.float64)
    logits = logits.reshape(bs * num_query, num_heads, num_levels * num_points)
    logits = logits - logits.max(-1, keepdims=True)
    e = np.exp(logits)
    ref_attn = e / e.sum(-1, keepdims=True)
    ref_attn = ref_attn.reshape(bs, num_query, num_heads, num_levels, num_points)
    ref_attn = ref_attn.transpose(0, 1, 3, 2, 4).reshape(bs, num_query, -1)
    np.testing.assert_allclose(np.asarray(at32), ref_attn, rtol=1e-4, atol=1e-4)

    # ---- fast bf16 MXU run (default path), checked vs its own intermediates -
    out_bf16, (vb, lxb, lyb, atb) = ms_deformable_attention_3d(
        query, value, reference_points, spatial_shapes, level_start_index,
        params, num_heads, num_levels, num_points, mxu_dtype=jnp.bfloat16)
    out_bf16 = jax.block_until_ready(out_bf16)
    refb = numpy_reference(vb, lxb, lyb, atb, spatial_shapes,
                           level_start_index, num_heads,
                           embed_dims // num_heads, num_levels, num_points)
    np.testing.assert_allclose(np.asarray(out_bf16), refb, rtol=5e-2, atol=5e-2)

    assert out_f32.shape == (bs, num_query, embed_dims)
    print("KERNEL_OK")
</pallas_src>

<mosaic_0001>
module attributes {stable_mosaic.version = 11 : i64} {
  func.func @_linear_kernel(%arg0: i32, %arg1: memref<160x32xf32, #tpu.memory_space<vmem>>, %arg2: memref<32x32xf32, #tpu.memory_space<vmem>>, %arg3: memref<1x32xf32, #tpu.memory_space<vmem>>, %arg4: memref<160x32xf32, #tpu.memory_space<vmem>>) attributes {dimension_semantics = [#tpu.dimension_semantics<parallel>], iteration_bounds = array<i64: 1>, scalar_prefetch = 0 : i64, scratch_operands = 0 : i64, tpu.core_type = #tpu.core_type<tc>, window_params = [{transform_indices = @transform_0, window_bounds = array<i64: 160, 32>}, {pipeline_mode = #tpu.pipeline_mode<synchronous>, transform_indices = @transform_1, window_bounds = array<i64: 32, 32>}, {pipeline_mode = #tpu.pipeline_mode<synchronous>, transform_indices = @transform_2, window_bounds = array<i64: 1, 32>}, {transform_indices = @transform_3, window_bounds = array<i64: 160, 32>}]} {
    %c0 = arith.constant 0 : index
    %c0_0 = arith.constant 0 : index
    %0 = vector.load %arg1[%c0, %c0_0] : memref<160x32xf32, #tpu.memory_space<vmem>>, vector<160x32xf32>
    %c0_1 = arith.constant 0 : index
    %c0_2 = arith.constant 0 : index
    %1 = vector.load %arg2[%c0_1, %c0_2] : memref<32x32xf32, #tpu.memory_space<vmem>>, vector<32x32xf32>
    %cst = arith.constant dense<0.000000e+00> : vector<160x32xf32>
    %2 = tpu.matmul %0, %1, %cst {dimension_numbers = #tpu.dot_dimension_numbers<[1], [0], [0], [1], [0, 0, 1, 1], [], []>} : vector<160x32xf32>, vector<32x32xf32>, vector<160x32xf32> -> vector<160x32xf32>
    %c0_3 = arith.constant 0 : index
    %c0_4 = arith.constant 0 : index
    %3 = vector.load %arg3[%c0_3, %c0_4] : memref<1x32xf32, #tpu.memory_space<vmem>>, vector<1x32xf32>
    %4 = vector.broadcast %3 : vector<1x32xf32> to vector<160x32xf32>
    %5 = arith.addf %2, %4 : vector<160x32xf32>
    %c0_5 = arith.constant 0 : index
    %c0_6 = arith.constant 0 : index
    %6 = vector.load %arg4[%c0_5, %c0_6] : memref<160x32xf32, #tpu.memory_space<vmem>>, vector<160x32xf32>
    tpu.vector_store %arg4[%c0_5, %c0_6], %5 {strides = array<i32>} : memref<160x32xf32, #tpu.memory_space<vmem>>, vector<160x32xf32>,
    return
  }
  func.func @transform_0(%arg0: i32) -> (i32, i32) {
    %c0_i32 = arith.constant 0 : i32
    %c0_i32_0 = arith.constant 0 : i32
    return %arg0, %c0_i32 : i32, i32
  }
  func.func @transform_1(%arg0: i32) -> (i32, i32) {
    %c0_i32 = arith.constant 0 : i32
    %c0_i32_0 = arith.constant 0 : i32
    %c0_i32_1 = arith.constant 0 : i32
    return %c0_i32, %c0_i32_0 : i32, i32
  }
  func.func @transform_2(%arg0: i32) -> (i32, i32) {
    %c0_i32 = arith.constant 0 : i32
    %c0_i32_0 = arith.constant 0 : i32
    %c0_i32_1 = arith.constant 0 : i32
    return %c0_i32, %c0_i32_0 : i32, i32
  }
  func.func @transform_3(%arg0: i32) -> (i32, i32) {
    %c0_i32 = arith.constant 0 : i32
    %c0_i32_0 = arith.constant 0 : i32
    return %arg0, %c0_i32 : i32, i32
  }
}

</mosaic_0001>

<llo_original>
// kernel: tpu_custom_call.1
$region0: #{tpu_custom_call.1}
  #allocation0 [shape = 'u32[]', space=smem, size = 0x4, offset = 0x4, fixed_abs, tag = 'smem constant byte address 0x4 - core index']
  #allocation1 [shape = 'u32[144,128]{1,0:T(1,128)}', space=vmem, size = 0x12000, scoped, tag = 'internal scratch']
  %s0 = inlined_call_operand.vmem [shape: f32[160,32], index: 0, kind: input, shape index: {}]
  %s1 = inlined_call_operand.vmem [shape: f32[32,32], index: 1, kind: input, shape index: {}]
  %s2 = inlined_call_operand.vmem [shape: f32[1,32], index: 2, kind: input, shape index: {}]
  %s3 = inlined_call_operand.vmem [shape: f32[160,32], index: 3, kind: output, shape index: {}]
  %s4 = sld [smem:[#allocation0]]
  $region22: #{tpu_custom_call.1} parent=0
    _
  %s6 = ssub.s32 1, %s4
  %s7 = scalar_select 0, %s6, %s4
  // Predicated region
  $region2: #{tpu_custom_call.1} parent=0 // pred_check
    _
  $region3: #{tpu_custom_call.1} parent=0 // pred_check_branch
    %9 = sbr.rel (0) target = $region5
  $region4: #{tpu_custom_call.1} parent=0 // pred_region
    _
  $region5: #{tpu_custom_call.1} parent=0 // pred_fallthru
    _
  // Predicated region
  $region6: #{tpu_custom_call.1} parent=0 // pred_check
    _
  $region7: #{tpu_custom_call.1} parent=0 // pred_check_branch
    %11 = sbr.rel (0) target = $region9
  $region8: #{tpu_custom_call.1} parent=0 // pred_region
    _
  $region9: #{tpu_custom_call.1} parent=0 // pred_fallthru
    _
  // Predicated region
  $region10: #{tpu_custom_call.1} parent=0 // pred_check
    _
  $region11: #{tpu_custom_call.1} parent=0 // pred_check_branch
    %13 = sbr.rel (0) target = $region13
  $region12: #{tpu_custom_call.1} parent=0 // pred_region
    _
  $region13: #{tpu_custom_call.1} parent=0 // pred_fallthru
    _
  %v14 = vld [vmem:[%s0] sm:$0xff]
  %v15 = vld [vmem:[%s0 + $0x8] sm:$0xff]
  %v16 = vld [vmem:[%s0 + $0x10] sm:$0xff]
  %v17 = vld [vmem:[%s0 + $0x18] sm:$0xff]
  %v18 = vld [vmem:[%s0 + $0x20] sm:$0xff]
  %v19 = vld [vmem:[%s0 + $0x28] sm:$0xff]
  %v20 = vld [vmem:[%s0 + $0x30] sm:$0xff]
  %v21 = vld [vmem:[%s0 + $0x38] sm:$0xff]
  %v22 = vld [vmem:[%s0 + $0x40] sm:$0xff]
  %v23 = vld [vmem:[%s0 + $0x48] sm:$0xff]
  %v24 = vld [vmem:[%s0 + $0x50] sm:$0xff]
  %v25 = vld [vmem:[%s0 + $0x58] sm:$0xff]
  %v26 = vld [vmem:[%s0 + $0x60] sm:$0xff]
  %v27 = vld [vmem:[%s0 + $0x68] sm:$0xff]
  %v28 = vld [vmem:[%s0 + $0x70] sm:$0xff]
  %v29 = vld [vmem:[%s0 + $0x78] sm:$0xff]
  %v30 = vld [vmem:[%s0 + $0x80] sm:$0xff]
  %v31 = vld [vmem:[%s0 + $0x88] sm:$0xff]
  %v32 = vld [vmem:[%s0 + $0x90] sm:$0xff]
  %v33 = vld [vmem:[%s0 + $0x98] sm:$0xff]
  %v34 = vld [vmem:[%s1] sm:$0xff]
  %v35 = vld [vmem:[%s1 + $0x8] sm:$0xff]
  %v36 = vld [vmem:[%s1 + $0x10] sm:$0xff]
  %v37 = vld [vmem:[%s1 + $0x18] sm:$0xff]
  %v38 = vld [vmem:[%s2] sm:$0x1]
  %v40 = vlaneseq
  %v41 = vshrl.u32 %v40, 7
  %v42 = vsub.s32 0, %v41
  %v43 = vrot.slane %v38, %v42
  %vm45 = vcmask 261120
  %v47 = vsel %vm45, %v14, 0
  %v50 = vsel %vm45, %v15, 0
  %v53 = vsel %vm45, %v16, 0
  %v56 = vsel %vm45, %v17, 0
  %v59 = vsel %vm45, %v18, 0
  %v62 = vsel %vm45, %v19, 0
  %v65 = vsel %vm45, %v20, 0
  %v68 = vsel %vm45, %v21, 0
  %v71 = vsel %vm45, %v22, 0
  %v74 = vsel %vm45, %v23, 0
  %v77 = vsel %vm45, %v24, 0
  %v80 = vsel %vm45, %v25, 0
  %v83 = vsel %vm45, %v26, 0
  %v86 = vsel %vm45, %v27, 0
  %v89 = vsel %vm45, %v28, 0
  %v92 = vsel %vm45, %v29, 0
  %v95 = vsel %vm45, %v30, 0
  %v98 = vsel %vm45, %v31, 0
  %v101 = vsel %vm45, %v32, 0
  %v104 = vsel %vm45, %v33, 0
  %106 = vmatprep.subr.mxu0 0.0
  %107 = vmatpush1.msra.mxu0 %v34
  %108 = vmatprep.subr.mxu0 0.0
  %109 = vmatpush1.msra.mxu0 %v35
  %110 = vmatprep.subr.mxu0 0.0
  %111 = vmatpush1.msra.mxu0 %v36
  %112 = vmatprep.subr.mxu0 0.0
  %113 = vmatpush1.msra.mxu0 %v37
  %114 = vmatprep.subr.mxu0 0.0
  %115 = vmatpush1.msra.mxu0 0.0
  %116 = vmatprep.subr.mxu0 0.0
  %117 = vmatpush1.msra.mxu0 0.0
  %118 = vmatprep.subr.mxu0 0.0
  %119 = vmatpush1.msra.mxu0 0.0
  %120 = vmatprep.subr.mxu0 0.0
  %121 = vmatpush1.msra.mxu0 0.0
  %122 = vmatprep.subr.mxu0 0.0
  %123 = vmatpush1.msra.mxu0 0.0
  %124 = vmatprep.subr.mxu0 0.0
  %125 = vmatpush1.msra.mxu0 0.0
  %126 = vmatprep.subr.mxu0 0.0
  %127 = vmatpush1.msra.mxu0 0.0
  %128 = vmatprep.subr.mxu0 0.0
  %129 = vmatpush1.msra.mxu0 0.0
  %130 = vmatprep.subr.mxu0 0.0
  %131 = vmatpush1.msra.mxu0 0.0
  %132 = vmatprep.subr.mxu0 0.0
  %133 = vmatpush1.msra.mxu0 0.0
  %134 = vmatprep.subr.mxu0 0.0
  %135 = vmatpush1.msra.mxu0 0.0
  %136 = vmatprep.subr.mxu0 0.0
  %137 = vmatpush1.msra.mxu0 0.0
  %138 = vmatprep.subr.mxu0 0.0
  %139 = vmatpush1.msra.mxu0 0.0
  %140 = vmatprep.subr.mxu0 0.0
  %141 = vmatpush1.msra.mxu0 0.0
  %142 = vmatprep.subr.mxu0 0.0
  %143 = vmatpush1.msra.mxu0 0.0
  %144 = vmatprep.subr.mxu0 0.0
  %145 = vmatpush1.msra.mxu0 0.0
  %146 = vmatprep.subr.mxu0 0.0
  %147 = vmatpush1.msra.mxu0 0.0
  %148 = vmatprep.subr.mxu0 0.0
  %149 = vmatpush1.msra.mxu0 0.0
  %150 = vmatprep.subr.mxu0 0.0
  %151 = vmatpush1.msra.mxu0 0.0
  %152 = vmatprep.subr.mxu0 0.0
  %153 = vmatpush1.msra.mxu0 0.0
  %154 = vmatprep.subr.mxu0 0.0
  %155 = vmatpush1.msra.mxu0 0.0
  %156 = vmatprep.subr.mxu0 0.0
  %157 = vmatpush1.msra.mxu0 0.0
  %158 = vmatprep.subr.mxu0 0.0
  %159 = vmatpush1.msra.mxu0 0.0
  %160 = vmatprep.subr.mxu0 0.0
  %161 = vmatpush1.msra.mxu0 0.0
  %162 = vmatprep.subr.mxu0 0.0
  %163 = vmatpush1.msra.mxu0 0.0
  %164 = vmatprep.subr.mxu0 0.0
  %165 = vmatpush1.msra.mxu0 0.0
  %166 = vmatprep.subr.mxu0 0.0
  %167 = vmatpush1.msra.mxu0 0.0
  %168 = vmatprep.subr.mxu0 0.0
  %169 = vmatpush1.msra.mxu0 0.0
  %170 = vmatprep.mubr.f32.mxu0 0.0
  %171 = vmatmul.mubr.f32.gmra.mrb[0].mxu0 %v47
  %v172 = vpop.f32.mrb[0].mxu0
  %v173 = vadd.f32 %v43, %v172
  %v174 = vpop.f32.mrb[0].mxu0
  %175 = vmatprep.mubr.f32.mxu0 0.0
  %176 = vmatmul.mubr.f32.gmra.mrb[0].mxu0 %v50
  %v177 = vpop.f32.mrb[0].mxu0
  %v178 = vadd.f32 %v43, %v177
  %v179 = vpop.f32.mrb[0].mxu0
  %180 = vmatprep.mubr.f32.mxu0 0.0
  %181 = vmatmul.mubr.f32.gmra.mrb[0].mxu0 %v53
  %v182 = vpop.f32.mrb[0].mxu0
  %v183 = vadd.f32 %v43, %v182
  %v184 = vpop.f32.mrb[0].mxu0
  %185 = vmatprep.mubr.f32.mxu0 0.0
  %186 = vmatmul.mubr.f32.gmra.mrb[0].mxu0 %v56
  %v187 = vpop.f32.mrb[0].mxu0
  %v188 = vadd.f32 %v43, %v187
  %v189 = vpop.f32.mrb[0].mxu0
  %190 = vmatprep.mubr.f32.mxu0 0.0
  %191 = vmatmul.mubr.f32.gmra.mrb[0].mxu0 %v59
  %v192 = vpop.f32.mrb[0].mxu0
  %v193 = vadd.f32 %v43, %v192
  %v194 = vpop.f32.mrb[0].mxu0
  %195 = vmatprep.mubr.f32.mxu0 0.0
  %196 = vmatmul.mubr.f32.gmra.mrb[0].mxu0 %v62
  %v197 = vpop.f32.mrb[0].mxu0
  %v198 = vadd.f32 %v43, %v197
  %v199 = vpop.f32.mrb[0].mxu0
  %200 = vmatprep.mubr.f32.mxu0 0.0
  %201 = vmatmul.mubr.f32.gmra.mrb[0].mxu0 %v65
  %v202 = vpop.f32.mrb[0].mxu0
  %v203 = vadd.f32 %v43, %v202
  %v204 = vpop.f32.mrb[0].mxu0
  %205 = vmatprep.mubr.f32.mxu0 0.0
  %206 = vmatmul.mubr.f32.gmra.mrb[0].mxu0 %v68
  %v207 = vpop.f32.mrb[0].mxu0
  %v208 = vadd.f32 %v43, %v207
  %v209 = vpop.f32.mrb[0].mxu0
  %210 = vmatprep.mubr.f32.mxu0 0.0
  %211 = vmatmul.mubr.f32.gmra.mrb[0].mxu0 %v71
  %v212 = vpop.f32.mrb[0].mxu0
  %v213 = vadd.f32 %v43, %v212
  %v214 = vpop.f32.mrb[0].mxu0
  %215 = vmatprep.mubr.f32.mxu0 0.0
  %216 = vmatmul.mubr.f32.gmra.mrb[0].mxu0 %v74
  %v217 = vpop.f32.mrb[0].mxu0
  %v218 = vadd.f32 %v43, %v217
  %v219 = vpop.f32.mrb[0].mxu0
  %220 = vmatprep.mubr.f32.mxu0 0.0
  %221 = vmatmul.mubr.f32.gmra.mrb[0].mxu0 %v77
  %v222 = vpop.f32.mrb[0].mxu0
  %v223 = vadd.f32 %v43, %v222
  %v224 = vpop.f32.mrb[0].mxu0
  %225 = vmatprep.mubr.f32.mxu0 0.0
  %226 = vmatmul.mubr.f32.gmra.mrb[0].mxu0 %v80
  %v227 = vpop.f32.mrb[0].mxu0
  %v228 = vadd.f32 %v43, %v227
  %v229 = vpop.f32.mrb[0].mxu0
  %230 = vmatprep.mubr.f32.mxu0 0.0
  %231 = vmatmul.mubr.f32.gmra.mrb[0].mxu0 %v83
  %v232 = vpop.f32.mrb[0].mxu0
  %v233 = vadd.f32 %v43, %v232
  %v234 = vpop.f32.mrb[0].mxu0
  %235 = vmatprep.mubr.f32.mxu0 0.0
  %236 = vmatmul.mubr.f32.gmra.mrb[0].mxu0 %v86
  %v237 = vpop.f32.mrb[0].mxu0
  %v238 = vadd.f32 %v43, %v237
  %v239 = vpop.f32.mrb[0].mxu0
  %240 = vmatprep.mubr.f32.mxu0 0.0
  %241 = vmatmul.mubr.f32.gmra.mrb[0].mxu0 %v89
  %v242 = vpop.f32.mrb[0].mxu0
  %v243 = vadd.f32 %v43, %v242
  %v244 = vpop.f32.mrb[0].mxu0
  %245 = vmatprep.mubr.f32.mxu0 0.0
  %246 = vmatmul.mubr.f32.gmra.mrb[0].mxu0 %v92
  %v247 = vpop.f32.mrb[0].mxu0
  %v248 = vadd.f32 %v43, %v247
  %v249 = vpop.f32.mrb[0].mxu0
  %250 = vmatprep.mubr.f32.mxu0 0.0
  %251 = vmatmul.mubr.f32.gmra.mrb[0].mxu0 %v95
  %v252 = vpop.f32.mrb[0].mxu0
  %v253 = vadd.f32 %v43, %v252
  %v254 = vpop.f32.mrb[0].mxu0
  %255 = vmatprep.mubr.f32.mxu0 0.0
  %256 = vmatmul.mubr.f32.gmra.mrb[0].mxu0 %v98
  %v257 = vpop.f32.mrb[0].mxu0
  %v258 = vadd.f32 %v43, %v257
  %v259 = vpop.f32.mrb[0].mxu0
  %260 = vmatprep.mubr.f32.mxu0 0.0
  %261 = vmatmul.mubr.f32.gmra.mrb[0].mxu0 %v101
  %v262 = vpop.f32.mrb[0].mxu0
  %v263 = vadd.f32 %v43, %v262
  %v264 = vpop.f32.mrb[0].mxu0
  %265 = vmatprep.mubr.f32.mxu0 0.0
  %266 = vmatmul.mubr.f32.gmra.mrb[0].mxu0 %v104
  %v267 = vpop.f32.mrb[0].mxu0
  %v268 = vadd.f32 %v43, %v267
  %v269 = vpop.f32.mrb[0].mxu0
  %270 = vdwg.mxu0
  %271 = vst.msk [vmem:[%s3] sm:$0xff] %vm45, %v173
  %272 = vst.msk [vmem:[%s3 + $0x8] sm:$0xff] %vm45, %v178
  %273 = vst.msk [vmem:[%s3 + $0x10] sm:$0xff] %vm45, %v183
  %274 = vst.msk [vmem:[%s3 + $0x18] sm:$0xff] %vm45, %v188
  %275 = vst.msk [vmem:[%s3 + $0x20] sm:$0xff] %vm45, %v193
  %276 = vst.msk [vmem:[%s3 + $0x28] sm:$0xff] %vm45, %v198
  %277 = vst.msk [vmem:[%s3 + $0x30] sm:$0xff] %vm45, %v203
  %278 = vst.msk [vmem:[%s3 + $0x38] sm:$0xff] %vm45, %v208
  %279 = vst.msk [vmem:[%s3 + $0x40] sm:$0xff] %vm45, %v213
  %280 = vst.msk [vmem:[%s3 + $0x48] sm:$0xff] %vm45, %v218
  %281 = vst.msk [vmem:[%s3 + $0x50] sm:$0xff] %vm45, %v223
  %282 = vst.msk [vmem:[%s3 + $0x58] sm:$0xff] %vm45, %v228
  %283 = vst.msk [vmem:[%s3 + $0x60] sm:$0xff] %vm45, %v233
  %284 = vst.msk [vmem:[%s3 + $0x68] sm:$0xff] %vm45, %v238
  %285 = vst.msk [vmem:[%s3 + $0x70] sm:$0xff] %vm45, %v243
  %286 = vst.msk [vmem:[%s3 + $0x78] sm:$0xff] %vm45, %v248
  %287 = vst.msk [vmem:[%s3 + $0x80] sm:$0xff] %vm45, %v253
  %288 = vst.msk [vmem:[%s3 + $0x88] sm:$0xff] %vm45, %v258
  %289 = vst.msk [vmem:[%s3 + $0x90] sm:$0xff] %vm45, %v263
  %290 = vst.msk [vmem:[%s3 + $0x98] sm:$0xff] %vm45, %v268
  // Predicated region
  $region14: #{tpu_custom_call.1} parent=0 // pred_check
    _
  $region15: #{tpu_custom_call.1} parent=0 // pred_check_branch
    %292 = sbr.rel (0) target = $region17
  $region16: #{tpu_custom_call.1} parent=0 // pred_region
    _
  $region17: #{tpu_custom_call.1} parent=0 // pred_fallthru
    _
  // Predicated region
  $region18: #{tpu_custom_call.1} parent=0 // pred_check
    _
  $region19: #{tpu_custom_call.1} parent=0 // pred_check_branch
    %294 = sbr.rel (0) target = $region21
  $region20: #{tpu_custom_call.1} parent=0 // pred_region
    _
  $region21: #{tpu_custom_call.1} parent=0 // pred_fallthru
    _

</llo_original>
